<compile_context>
chip_gen: v5e
topology: v5e:2x2
jax: 0.10.0
libtpu: 0.0.40
codegen_flags: <defaults>
</compile_context>

<pallas_src>
import functools

import jax
import jax.numpy as jnp
from jax.experimental import pallas as pl
from jax.experimental.pallas import tpu as pltpu


_LANE = 128                       # lane width: pad all feature dims to this
_SUBLANE = 16                     # row-tile granularity (bf16 sublane pack)
_VMEM_LIMIT = 32 * 1024 * 1024    # explicit scoped-VMEM limit (fits all gens)
_VMEM_BUDGET = 28 * 1024 * 1024   # what we allow the fused kernel to use


def _round_up(n, m):
    return ((n + m - 1) // m) * m


def _pad2d(a, rows, cols):
    r, c = a.shape
    if r == rows and c == cols:
        return a
    return jnp.pad(a, ((0, rows - r), (0, cols - c)))


# ----------------------------------------------------------------------------
# Fused kernel: for one row tile, run every Linear(+ReLU) layer back-to-back.
#   refs = (x_ref, w0, b0, w1, b1, ..., o_ref, act_scratch)
# ----------------------------------------------------------------------------
def _mlp_fused_kernel(*refs, n_layers: int, compute_dtype):
    x_ref = refs[0]
    wb = refs[1:1 + 2 * n_layers]
    o_ref = refs[1 + 2 * n_layers]
    act_ref = refs[2 + 2 * n_layers]          # (tm, max_hidden) f32 scratch

    h = x_ref[...]                            # (tm, D0), already compute_dtype
    for li in range(n_layers):
        w_ref = wb[2 * li]                    # (D_in, D_out), compute_dtype
        b_ref = wb[2 * li + 1]                # (1,  D_out), f32
        d_out = w_ref.shape[1]
        y = jnp.dot(h.astype(compute_dtype), w_ref[...],
                    preferred_element_type=jnp.float32)
        y = y + b_ref[...]
        if li < n_layers - 1:
            y = jnp.maximum(y, 0.0)
            act_ref[:, :d_out] = y            # activation stays resident in VMEM
            h = act_ref[:, :d_out]
        else:
            o_ref[...] = y.astype(o_ref.dtype)


# ----------------------------------------------------------------------------
# Wrapper: flatten leading dims, pad to aligned tiles, one pallas_call.
# ----------------------------------------------------------------------------
def mlp_forward(params, x, *, tm: int = 512, compute_dtype=jnp.bfloat16):
    input_shape = x.shape
    out_dtype = x.dtype
    x2d = x.reshape(-1, input_shape[-1])
    M, K = x2d.shape
    n_layers = len(params)

    # Lane-dense padded feature dims for every layer boundary.
    dims = [K] + [w.shape[1] for (w, _) in params]
    pdims = [_round_up(d, _LANE) for d in dims]
    out_dim = dims[-1]
    dmax = max(pdims[1:-1]) if len(pdims) > 2 else _LANE

    # Pad + cast parameters (weights -> compute dtype, biases stay f32).
    flat_wb = []
    for li, (w, b) in enumerate(params):
        wp = _pad2d(w, pdims[li], pdims[li + 1]).astype(compute_dtype)
        bp = _pad2d(b.reshape(1, -1), 1, pdims[li + 1]).astype(jnp.float32)
        flat_wb += [wp, bp]

    # Row tile: sublane-aligned, no ragged last tile (rows are zero-padded).
    tm = max(_SUBLANE, min(_round_up(tm, _SUBLANE), _round_up(M, _SUBLANE)))

    w_item = jnp.dtype(compute_dtype).itemsize
    out_item = jnp.dtype(out_dtype).itemsize

    def vmem_est(t):
        wb_bytes = sum(pdims[i] * pdims[i + 1] * w_item + pdims[i + 1] * 4
                       for i in range(n_layers))
        return (2 * (wb_bytes
                     + t * pdims[0] * w_item
                     + t * pdims[-1] * out_item)
                + t * dmax * 4)

    while tm > _SUBLANE and vmem_est(tm) > _VMEM_BUDGET:
        tm = max(_SUBLANE, (tm // 2 // _SUBLANE) * _SUBLANE)
    if vmem_est(tm) > _VMEM_BUDGET:
        # TODO(synk): add an N/K-tiled per-layer matmul path (P1+P3 f32
        # accumulator) for layer widths whose weights do not fit in VMEM.
        raise NotImplementedError(
            "MLP weights too large for the fused single-pass kernel; "
            "N/K tiling is required.")

    M_pad = _round_up(M, tm)
    x_pad = _pad2d(x2d, M_pad, pdims[0]).astype(compute_dtype)

    in_specs = [pl.BlockSpec((tm, pdims[0]), lambda i: (i, 0))]
    for li in range(n_layers):
        d_in, d_out = pdims[li], pdims[li + 1]
        in_specs.append(pl.BlockSpec((d_in, d_out), lambda i: (0, 0)))  # W_li
        in_specs.append(pl.BlockSpec((1, d_out), lambda i: (0, 0)))     # b_li

    kernel = functools.partial(_mlp_fused_kernel,
                               n_layers=n_layers,
                               compute_dtype=compute_dtype)

    out = pl.pallas_call(
        kernel,
        out_shape=jax.ShapeDtypeStruct((M_pad, pdims[-1]), out_dtype),
        grid_spec=pltpu.PrefetchScalarGridSpec(
            num_scalar_prefetch=0,
            grid=(M_pad // tm,),
            in_specs=in_specs,
            out_specs=pl.BlockSpec((tm, pdims[-1]), lambda i: (i, 0)),
            scratch_shapes=[pltpu.VMEM((tm, dmax), jnp.float32)],
        ),
        compiler_params=pltpu.CompilerParams(
            dimension_semantics=("parallel",),
            vmem_limit_bytes=_VMEM_LIMIT),
    )(x_pad, *flat_wb)

    out = out[:M, :out_dim]
    return out.reshape(input_shape[:-1] + (out_dim,))


# ----------------------------------------------------------------------------
# Parameters (deterministic, mirrors torch.nn.Linear default init scale) and
# pure-JAX references.
# ----------------------------------------------------------------------------
def init_mlp_params(key, input_dim, output_dim, hidden_size=256, n_layers=1,
                    dtype=jnp.float32):
    """Linear(in, H), [ReLU, Linear(H, H)] * (n_layers-1), ReLU, Linear(H, out)."""
    dims = [input_dim] + [hidden_size] * n_layers + [output_dim]
    params = []
    for d_in, d_out in zip(dims[:-1], dims[1:]):
        key, kw, kb = jax.random.split(key, 3)
        bound = 1.0 / (d_in ** 0.5)
        w = jax.random.uniform(kw, (d_in, d_out), dtype, -bound, bound)
        b = jax.random.uniform(kb, (d_out,), dtype, -bound, bound)
        params.append((w, b))
    return params


def mlp_reference(params, x, compute_dtype=jnp.float32):
    """Pure-JAX reference (optionally with bf16 matmul operands, f32 accum)."""
    input_shape = x.shape
    h = x.reshape(-1, input_shape[-1])
    n = len(params)
    for idx, (w, b) in enumerate(params):
        y = jnp.dot(h.astype(compute_dtype), w.astype(compute_dtype),
                    preferred_element_type=jnp.float32) + b.astype(jnp.float32)
        h = jnp.maximum(y, 0.0) if idx < n - 1 else y
    h = h.astype(x.dtype)
    return h.reshape(input_shape[:-1] + (h.shape[-1],))


if __name__ == "__main__":
    key = jax.random.PRNGKey(0)

    # Small shapes consistent with the module: x = (batch, seq, input_dim)
    batch, seq = 2, 8
    input_dim, hidden_size, output_dim, n_layers = 16, 32, 8, 2

    key, kx = jax.random.split(key)
    x = jax.random.normal(kx, (batch, seq, input_dim), jnp.float32)

    params = init_mlp_params(key, input_dim, output_dim,
                             hidden_size=hidden_size, n_layers=n_layers)

    out = jax.block_until_ready(mlp_forward(params, x))

    ref_matched = mlp_reference(params, x, compute_dtype=jnp.bfloat16)
    ref_f32 = mlp_reference(params, x, compute_dtype=jnp.float32)

    assert out.shape == (batch, seq, output_dim), out.shape
    assert jnp.allclose(out, ref_matched, atol=1e-3, rtol=1e-3), \
        "mismatch vs matched-precision reference"
    assert jnp.allclose(out, ref_f32, atol=5e-2, rtol=5e-2), \
        "mismatch vs f32 reference"

    print("KERNEL_OK")
</pallas_src>

<mosaic_0001>
module attributes {stable_mosaic.version = 11 : i64} {
  func.func @_mlp_fused_kernel(%arg0: i32, %arg1: memref<16x128xbf16, #tpu.memory_space<vmem>>, %arg2: memref<128x128xbf16, #tpu.memory_space<vmem>>, %arg3: memref<1x128xf32, #tpu.memory_space<vmem>>, %arg4: memref<128x128xbf16, #tpu.memory_space<vmem>>, %arg5: memref<1x128xf32, #tpu.memory_space<vmem>>, %arg6: memref<128x128xbf16, #tpu.memory_space<vmem>>, %arg7: memref<1x128xf32, #tpu.memory_space<vmem>>, %arg8: memref<16x128xf32, #tpu.memory_space<vmem>>, %arg9: memref<16x128xf32, #tpu.memory_space<vmem>>) attributes {dimension_semantics = [#tpu.dimension_semantics<parallel>], iteration_bounds = array<i64: 1>, scalar_prefetch = 0 : i64, scratch_operands = 1 : i64, tpu.core_type = #tpu.core_type<tc>, window_params = [{transform_indices = @transform_0, window_bounds = array<i64: 16, 128>}, {pipeline_mode = #tpu.pipeline_mode<synchronous>, transform_indices = @transform_1, window_bounds = array<i64: 128, 128>}, {pipeline_mode = #tpu.pipeline_mode<synchronous>, transform_indices = @transform_2, window_bounds = array<i64: 1, 128>}, {pipeline_mode = #tpu.pipeline_mode<synchronous>, transform_indices = @transform_3, window_bounds = array<i64: 128, 128>}, {pipeline_mode = #tpu.pipeline_mode<synchronous>, transform_indices = @transform_4, window_bounds = array<i64: 1, 128>}, {pipeline_mode = #tpu.pipeline_mode<synchronous>, transform_indices = @transform_5, window_bounds = array<i64: 128, 128>}, {pipeline_mode = #tpu.pipeline_mode<synchronous>, transform_indices = @transform_6, window_bounds = array<i64: 1, 128>}, {transform_indices = @transform_7, window_bounds = array<i64: 16, 128>}]} {
    %c0 = arith.constant 0 : index
    %c0_0 = arith.constant 0 : index
    %0 = vector.load %arg1[%c0, %c0_0] : memref<16x128xbf16, #tpu.memory_space<vmem>>, vector<16x128xbf16>
    %c0_1 = arith.constant 0 : index
    %c0_2 = arith.constant 0 : index
    %1 = vector.load %arg2[%c0_1, %c0_2] : memref<128x128xbf16, #tpu.memory_space<vmem>>, vector<128x128xbf16>
    %cst = arith.constant dense<0.000000e+00> : vector<16x128xf32>
    %2 = tpu.matmul %0, %1, %cst {dimension_numbers = #tpu.dot_dimension_numbers<[1], [0], [0], [1], [0, 0, 1, 1], [], []>} : vector<16x128xbf16>, vector<128x128xbf16>, vector<16x128xf32> -> vector<16x128xf32>
    %c0_3 = arith.constant 0 : index
    %c0_4 = arith.constant 0 : index
    %3 = vector.load %arg3[%c0_3, %c0_4] : memref<1x128xf32, #tpu.memory_space<vmem>>, vector<1x128xf32>
    %4 = vector.broadcast %3 : vector<1x128xf32> to vector<16x128xf32>
    %5 = arith.addf %2, %4 : vector<16x128xf32>
    %cst_5 = arith.constant 0.000000e+00 : f32
    %6 = vector.broadcast %cst_5 : f32 to vector<16x128xf32>
    %7 = arith.maximumf %5, %6 : vector<16x128xf32>
    %c0_6 = arith.constant 0 : index
    %c0_7 = arith.constant 0 : index
    %8 = vector.load %arg9[%c0_6, %c0_7] : memref<16x128xf32, #tpu.memory_space<vmem>>, vector<16x128xf32>
    tpu.vector_store %arg9[%c0_6, %c0_7], %7 {strides = array<i32>} : memref<16x128xf32, #tpu.memory_space<vmem>>, vector<16x128xf32>,
    %c0_8 = arith.constant 0 : index
    %c0_9 = arith.constant 0 : index
    %9 = vector.load %arg9[%c0_8, %c0_9] : memref<16x128xf32, #tpu.memory_space<vmem>>, vector<16x128xf32>
    %10 = arith.truncf %9 : vector<16x128xf32> to vector<16x128xbf16>
    %c0_10 = arith.constant 0 : index
    %c0_11 = arith.constant 0 : index
    %11 = vector.load %arg4[%c0_10, %c0_11] : memref<128x128xbf16, #tpu.memory_space<vmem>>, vector<128x128xbf16>
    %cst_12 = arith.constant dense<0.000000e+00> : vector<16x128xf32>
    %12 = tpu.matmul %10, %11, %cst_12 {dimension_numbers = #tpu.dot_dimension_numbers<[1], [0], [0], [1], [0, 0, 1, 1], [], []>} : vector<16x128xbf16>, vector<128x128xbf16>, vector<16x128xf32> -> vector<16x128xf32>
    %c0_13 = arith.constant 0 : index
    %c0_14 = arith.constant 0 : index
    %13 = vector.load %arg5[%c0_13, %c0_14] : memref<1x128xf32, #tpu.memory_space<vmem>>, vector<1x128xf32>
    %14 = vector.broadcast %13 : vector<1x128xf32> to vector<16x128xf32>
    %15 = arith.addf %12, %14 : vector<16x128xf32>
    %cst_15 = arith.constant 0.000000e+00 : f32
    %16 = vector.broadcast %cst_15 : f32 to vector<16x128xf32>
    %17 = arith.maximumf %15, %16 : vector<16x128xf32>
    %c0_16 = arith.constant 0 : index
    %c0_17 = arith.constant 0 : index
    %18 = vector.load %arg9[%c0_16, %c0_17] : memref<16x128xf32, #tpu.memory_space<vmem>>, vector<16x128xf32>
    tpu.vector_store %arg9[%c0_16, %c0_17], %17 {strides = array<i32>} : memref<16x128xf32, #tpu.memory_space<vmem>>, vector<16x128xf32>,
    %c0_18 = arith.constant 0 : index
    %c0_19 = arith.constant 0 : index
    %19 = vector.load %arg9[%c0_18, %c0_19] : memref<16x128xf32, #tpu.memory_space<vmem>>, vector<16x128xf32>
    %20 = arith.truncf %19 : vector<16x128xf32> to vector<16x128xbf16>
    %c0_20 = arith.constant 0 : index
    %c0_21 = arith.constant 0 : index
    %21 = vector.load %arg6[%c0_20, %c0_21] : memref<128x128xbf16, #tpu.memory_space<vmem>>, vector<128x128xbf16>
    %cst_22 = arith.constant dense<0.000000e+00> : vector<16x128xf32>
    %22 = tpu.matmul %20, %21, %cst_22 {dimension_numbers = #tpu.dot_dimension_numbers<[1], [0], [0], [1], [0, 0, 1, 1], [], []>} : vector<16x128xbf16>, vector<128x128xbf16>, vector<16x128xf32> -> vector<16x128xf32>
    %c0_23 = arith.constant 0 : index
    %c0_24 = arith.constant 0 : index
    %23 = vector.load %arg7[%c0_23, %c0_24] : memref<1x128xf32, #tpu.memory_space<vmem>>, vector<1x128xf32>
    %24 = vector.broadcast %23 : vector<1x128xf32> to vector<16x128xf32>
    %25 = arith.addf %22, %24 : vector<16x128xf32>
    %c0_25 = arith.constant 0 : index
    %c0_26 = arith.constant 0 : index
    %26 = vector.load %arg8[%c0_25, %c0_26] : memref<16x128xf32, #tpu.memory_space<vmem>>, vector<16x128xf32>
    tpu.vector_store %arg8[%c0_25, %c0_26], %25 {strides = array<i32>} : memref<16x128xf32, #tpu.memory_space<vmem>>, vector<16x128xf32>,
    return
  }
  func.func @transform_0(%arg0: i32) -> (i32, i32) {
    %c0_i32 = arith.constant 0 : i32
    %c0_i32_0 = arith.constant 0 : i32
    return %arg0, %c0_i32 : i32, i32
  }
  func.func @transform_1(%arg0: i32) -> (i32, i32) {
    %c0_i32 = arith.constant 0 : i32
    %c0_i32_0 = arith.constant 0 : i32
    %c0_i32_1 = arith.constant 0 : i32
    return %c0_i32, %c0_i32_0 : i32, i32
  }
  func.func @transform_2(%arg0: i32) -> (i32, i32) {
    %c0_i32 = arith.constant 0 : i32
    %c0_i32_0 = arith.constant 0 : i32
    %c0_i32_1 = arith.constant 0 : i32
    return %c0_i32, %c0_i32_0 : i32, i32
  }
  func.func @transform_3(%arg0: i32) -> (i32, i32) {
    %c0_i32 = arith.constant 0 : i32
    %c0_i32_0 = arith.constant 0 : i32
    %c0_i32_1 = arith.constant 0 : i32
    return %c0_i32, %c0_i32_0 : i32, i32
  }
  func.func @transform_4(%arg0: i32) -> (i32, i32) {
    %c0_i32 = arith.constant 0 : i32
    %c0_i32_0 = arith.constant 0 : i32
    %c0_i32_1 = arith.constant 0 : i32
    return %c0_i32, %c0_i32_0 : i32, i32
  }
  func.func @transform_5(%arg0: i32) -> (i32, i32) {
    %c0_i32 = arith.constant 0 : i32
    %c0_i32_0 = arith.constant 0 : i32
    %c0_i32_1 = arith.constant 0 : i32
    return %c0_i32, %c0_i32_0 : i32, i32
  }
  func.func @transform_6(%arg0: i32) -> (i32, i32) {
    %c0_i32 = arith.constant 0 : i32
    %c0_i32_0 = arith.constant 0 : i32
    %c0_i32_1 = arith.constant 0 : i32
    return %c0_i32, %c0_i32_0 : i32, i32
  }
  func.func @transform_7(%arg0: i32) -> (i32, i32) {
    %c0_i32 = arith.constant 0 : i32
    %c0_i32_0 = arith.constant 0 : i32
    return %arg0, %c0_i32 : i32, i32
  }
}

</mosaic_0001>

<llo_original>
// kernel: tpu_custom_call.1
$region0: #{tpu_custom_call.1}
  #allocation0 [shape = 'u32[]', space=smem, size = 0x4, offset = 0x4, fixed_abs, tag = 'smem constant byte address 0x4 - core index']
  #allocation1 [shape = 'u32[72,128]{1,0:T(1,128)}', space=vmem, size = 0x9000, scoped, tag = 'internal scratch']
  #allocation2 [shape = 'f32[16,128]{1,0:T(8,128)}', space=vmem, size = 0x2000, scoped, tag = 'scratch operand']
  %s0 = inlined_call_operand.hbm [shape: bf16[16,128], index: 0, kind: input, shape index: {}]
  %s1 = inlined_call_operand.hbm [shape: bf16[128,128], index: 1, kind: input, shape index: {}]
  %s2 = inlined_call_operand.vmem [shape: f32[1,128], index: 2, kind: input, shape index: {}]
  %s3 = inlined_call_operand.hbm [shape: bf16[128,128], index: 3, kind: input, shape index: {}]
  %s4 = inlined_call_operand.vmem [shape: f32[1,128], index: 4, kind: input, shape index: {}]
  %s5 = inlined_call_operand.hbm [shape: bf16[128,128], index: 5, kind: input, shape index: {}]
  %s6 = inlined_call_operand.vmem [shape: f32[1,128], index: 6, kind: input, shape index: {}]
  %s7 = inlined_call_operand.hbm [shape: f32[16,128], index: 7, kind: output, shape index: {}]
  %s8 = sld [smem:[#allocation0]]
  $region54: #{tpu_custom_call.1} parent=0
    _
  %s10 = ssub.s32 1, %s8
  %s11 = scalar_select 0, %s10, %s8
  $region1: #{tpu_custom_call.1} parent=0
    #allocation3 [shape = 'u8[4096]{0}', space=vmem, size = 0x1000, scoped, tag = 'input window, operand 0, single buffered']
    #allocation4 [shape = 's32[1]{0}', space=sflag, size = 0x4, scoped, tag = 'scoped memory for tpu_custom_call.1']
    #allocation5 [shape = 's32[1]{0}', space=sflag, size = 0x4, scoped, tag = 'scoped memory for tpu_custom_call.1']
    #allocation6 [shape = 'u8[32768]{0}', space=vmem, size = 0x8000, scoped, tag = 'input window, operand 1, single buffered']
    #allocation7 [shape = 's32[1]{0}', space=sflag, size = 0x4, scoped, tag = 'scoped memory for tpu_custom_call.1']
    #allocation8 [shape = 'u8[32768]{0}', space=vmem, size = 0x8000, scoped, tag = 'input window, operand 3, single buffered']
    #allocation9 [shape = 'u8[32768]{0}', space=vmem, size = 0x8000, scoped, tag = 'input window, operand 5, single buffered']
    #allocation10 [shape = 's32[1]{0}', space=sflag, size = 0x4, scoped, tag = 'scoped memory for tpu_custom_call.1']
    #allocation11 [shape = 'u8[8192]{0}', space=vmem, size = 0x2000, scoped, tag = 'output window, operand 0, single buffered']
    %12 = vsyncpa [#allocation4], 0
    %13 = vsyncpa [#allocation7], 0
    %14 = vsyncpa [#allocation10], 0
    %15 = vsyncpa [#allocation5], 0
    // Predicated region
    $region2: #{tpu_custom_call.1} parent=1 // pred_check
      _
    $region3: #{tpu_custom_call.1} parent=1 // pred_check_branch
      %17 = sbr.rel (0) target = $region5
    $region4: #{tpu_custom_call.1} parent=1 // pred_region
      %19 = vsyncadd [#allocation4], 0
      %s20 = sshll.u32 %s0, 4
      %s21 = int_to_ptr.hbm [resolvable:$true] %s20
      %s22 = sshll.u32 [#allocation3], 4
      %s23 = int_to_ptr.vmem [resolvable:$true] %s22
      %28 = dma.hbm_to_vmem [thread:$0]  %s21, 128, %s23, [#allocation4], 64, 64, 4
    $region5: #{tpu_custom_call.1} parent=1 // pred_fallthru
      _
    // Predicated region
    $region6: #{tpu_custom_call.1} parent=1 // pred_check
      _
    $region7: #{tpu_custom_call.1} parent=1 // pred_check_branch
      %30 = sbr.rel (0) target = $region9
    $region8: #{tpu_custom_call.1} parent=1 // pred_region
      %32 = vsyncadd [#allocation7], 0
      %s33 = sshll.u32 %s1, 4
      %s34 = int_to_ptr.hbm [resolvable:$true] %s33
      %s35 = sshll.u32 [#allocation6], 4
      %s36 = int_to_ptr.vmem [resolvable:$true] %s35
      %41 = dma.hbm_to_vmem [thread:$0]  %s34, 1024, %s36, [#allocation7], 64, 64, 4
    $region9: #{tpu_custom_call.1} parent=1 // pred_fallthru
      _
    // Predicated region
    $region10: #{tpu_custom_call.1} parent=1 // pred_check
      _
    $region11: #{tpu_custom_call.1} parent=1 // pred_check_branch
      %43 = sbr.rel (0) target = $region13
    $region12: #{tpu_custom_call.1} parent=1 // pred_region
      _
    $region13: #{tpu_custom_call.1} parent=1 // pred_fallthru
      _
    // Predicated region
    $region14: #{tpu_custom_call.1} parent=1 // pred_check
      _
    $region15: #{tpu_custom_call.1} parent=1 // pred_check_branch
      %45 = sbr.rel (0) target = $region17
    $region16: #{tpu_custom_call.1} parent=1 // pred_region
      %47 = vsyncadd [#allocation7], 0
      %s48 = sshll.u32 %s3, 4
      %s49 = int_to_ptr.hbm [resolvable:$true] %s48
      %s50 = sshll.u32 [#allocation8], 4
      %s51 = int_to_ptr.vmem [resolvable:$true] %s50
      %56 = dma.hbm_to_vmem [thread:$0]  %s49, 1024, %s51, [#allocation7], 64, 64, 4
    $region17: #{tpu_custom_call.1} parent=1 // pred_fallthru
      _
    // Predicated region
    $region18: #{tpu_custom_call.1} parent=1 // pred_check
      _
    $region19: #{tpu_custom_call.1} parent=1 // pred_check_branch
      %58 = sbr.rel (0) target = $region21
    $region20: #{tpu_custom_call.1} parent=1 // pred_region
      _
    $region21: #{tpu_custom_call.1} parent=1 // pred_fallthru
      _
    // Predicated region
    $region22: #{tpu_custom_call.1} parent=1 // pred_check
      _
    $region23: #{tpu_custom_call.1} parent=1 // pred_check_branch
      %60 = sbr.rel (0) target = $region25
    $region24: #{tpu_custom_call.1} parent=1 // pred_region
      %62 = vsyncadd [#allocation10], 0
      %s63 = sshll.u32 %s5, 4
      %s64 = int_to_ptr.hbm [resolvable:$true] %s63
      %s65 = sshll.u32 [#allocation9], 4
      %s66 = int_to_ptr.vmem [resolvable:$true] %s65
      %71 = dma.hbm_to_vmem [thread:$0]  %s64, 1024, %s66, [#allocation10], 64, 64, 4
    $region25: #{tpu_custom_call.1} parent=1 // pred_fallthru
      _
    // Predicated region
    $region26: #{tpu_custom_call.1} parent=1 // pred_check
      _
    $region27: #{tpu_custom_call.1} parent=1 // pred_check_branch
      %73 = sbr.rel (0) target = $region29
    $region28: #{tpu_custom_call.1} parent=1 // pred_region
      _
    $region29: #{tpu_custom_call.1} parent=1 // pred_fallthru
      _
    // Predicated region
    $region30: #{tpu_custom_call.1} parent=1 // pred_check
      _
    $region31: #{tpu_custom_call.1} parent=1 // pred_check_branch
      %75 = sbr.rel (0) target = $region33
    $region32: #{tpu_custom_call.1} parent=1 // pred_region
      %77 = dma.done [#allocation4], 128
    $region33: #{tpu_custom_call.1} parent=1 // pred_fallthru
      _
    // Predicated region
    $region34: #{tpu_custom_call.1} parent=1 // pred_check
      _
    $region35: #{tpu_custom_call.1} parent=1 // pred_check_branch
      %79 = sbr.rel (0) target = $region37
    $region36: #{tpu_custom_call.1} parent=1 // pred_region
      %81 = dma.done [#allocation7], 1024
    $region37: #{tpu_custom_call.1} parent=1 // pred_fallthru
      _
    // Predicated region
    $region38: #{tpu_custom_call.1} parent=1 // pred_check
      _
    $region39: #{tpu_custom_call.1} parent=1 // pred_check_branch
      %83 = sbr.rel (0) target = $region41
    $region40: #{tpu_custom_call.1} parent=1 // pred_region
      %85 = dma.done [#allocation7], 1024
    $region41: #{tpu_custom_call.1} parent=1 // pred_fallthru
      _
    // Predicated region
    $region42: #{tpu_custom_call.1} parent=1 // pred_check
      _
    $region43: #{tpu_custom_call.1} parent=1 // pred_check_branch
      %87 = sbr.rel (0) target = $region45
    $region44: #{tpu_custom_call.1} parent=1 // pred_region
      %89 = dma.done [#allocation10], 1024
    $region45: #{tpu_custom_call.1} parent=1 // pred_fallthru
      _
    %v90 = vld [vmem:[#allocation3] sm:$0xf]
    %v91 = vld [vmem:[#allocation3 + $0x4] sm:$0xf]
    %v92 = vld [vmem:[#allocation6] sm:$0xf]
    %v93 = vld [vmem:[#allocation6 + $0x4] sm:$0xf]
    %v94 = vld [vmem:[#allocation6 + $0x8] sm:$0xf]
    %v95 = vld [vmem:[#allocation6 + $0xc] sm:$0xf]
    %v96 = vld [vmem:[#allocation6 + $0x10] sm:$0xf]
    %v97 = vld [vmem:[#allocation6 + $0x14] sm:$0xf]
    %v98 = vld [vmem:[#allocation6 + $0x18] sm:$0xf]
    %v99 = vld [vmem:[#allocation6 + $0x1c] sm:$0xf]
    %v100 = vld [vmem:[#allocation6 + $0x20] sm:$0xf]
    %v101 = vld [vmem:[#allocation6 + $0x24] sm:$0xf]
    %v102 = vld [vmem:[#allocation6 + $0x28] sm:$0xf]
    %v103 = vld [vmem:[#allocation6 + $0x2c] sm:$0xf]
    %v104 = vld [vmem:[#allocation6 + $0x30] sm:$0xf]
    %v105 = vld [vmem:[#allocation6 + $0x34] sm:$0xf]
    %v106 = vld [vmem:[#allocation6 + $0x38] sm:$0xf]
    %v107 = vld [vmem:[#allocation6 + $0x3c] sm:$0xf]
    %v108 = vld [vmem:[%s2] sm:$0x1]
    %v110 = vperm.slane %v108, 0
    %v114 = vunpack.c.l.b16 %v90
    %v115 = vunpack.c.l.b16 %v91
    %v116 = vpack.c.b16 %v115, %v114
    %v134 = vunpack.c.l.b16 %v92
    %v135 = vunpack.c.l.b16 %v93
    %v136 = vunpack.c.l.b16 %v94
    %v137 = vunpack.c.l.b16 %v95
    %v138 = vunpack.c.l.b16 %v96
    %v139 = vunpack.c.l.b16 %v97
    %v140 = vunpack.c.l.b16 %v98
    %v141 = vunpack.c.l.b16 %v99
    %v142 = vunpack.c.l.b16 %v100
    %v143 = vunpack.c.l.b16 %v101
    %v144 = vunpack.c.l.b16 %v102
    %v145 = vunpack.c.l.b16 %v103
    %v146 = vunpack.c.l.b16 %v104
    %v147 = vunpack.c.l.b16 %v105
    %v148 = vunpack.c.l.b16 %v106
    %v149 = vunpack.c.l.b16 %v107
    %v150 = vpack.c.b16 %v135, %v134
    %v151 = vpack.c.b16 %v137, %v136
    %v152 = vpack.c.b16 %v139, %v138
    %v153 = vpack.c.b16 %v141, %v140
    %v154 = vpack.c.b16 %v143, %v142
    %v155 = vpack.c.b16 %v145, %v144
    %v156 = vpack.c.b16 %v147, %v146
    %v157 = vpack.c.b16 %v149, %v148
    %166 = vmatpush.bf16.msra.mxu0 %v157
    %167 = vmatpush.bf16.msra.mxu0 %v156
    %168 = vmatpush.bf16.msra.mxu0 %v155
    %169 = vmatpush.bf16.msra.mxu0 %v154
    %170 = vmatpush.bf16.msra.mxu0 %v153
    %171 = vmatpush.bf16.msra.mxu0 %v152
    %172 = vmatpush.bf16.msra.mxu0 %v151
    %173 = vmatpush.bf16.msra.mxu0 %v150
    %174 = vmatmul.bf16.gmra.mxu0 %v116
    %v175 = vpop.f32.mrf.mxu0
    %v176 = vadd.f32 %v110, %v175
    %v177 = vpop.f32.mrf.mxu0
    %v178 = vadd.f32 %v110, %v177
    %179 = vdwg.mxu0
    %v180 = vmax.f32 %v176, 0.0
    %v181 = vmax.f32 %v178, 0.0
    %182 = vst [vmem:[#allocation2] sm:$0xff] %v180
    %183 = vst [vmem:[#allocation2 + $0x8] sm:$0xff] %v181
    %v184 = vld [vmem:[#allocation2] sm:$0xff]
    %v185 = vld [vmem:[#allocation2 + $0x8] sm:$0xff]
    %v186 = vpack.c.bf16 %v185, %v184
    %v187 = vld [vmem:[#allocation8] sm:$0xf]
    %v188 = vld [vmem:[#allocation8 + $0x4] sm:$0xf]
    %v189 = vld [vmem:[#allocation8 + $0x8] sm:$0xf]
    %v190 = vld [vmem:[#allocation8 + $0xc] sm:$0xf]
    %v191 = vld [vmem:[#allocation8 + $0x10] sm:$0xf]
    %v192 = vld [vmem:[#allocation8 + $0x14] sm:$0xf]
    %v193 = vld [vmem:[#allocation8 + $0x18] sm:$0xf]
    %v194 = vld [vmem:[#allocation8 + $0x1c] sm:$0xf]
    %v195 = vld [vmem:[#allocation8 + $0x20] sm:$0xf]
    %v196 = vld [vmem:[#allocation8 + $0x24] sm:$0xf]
    %v197 = vld [vmem:[#allocation8 + $0x28] sm:$0xf]
    %v198 = vld [vmem:[#allocation8 + $0x2c] sm:$0xf]
    %v199 = vld [vmem:[#allocation8 + $0x30] sm:$0xf]
    %v200 = vld [vmem:[#allocation8 + $0x34] sm:$0xf]
    %v201 = vld [vmem:[#allocation8 + $0x38] sm:$0xf]
    %v202 = vld [vmem:[#allocation8 + $0x3c] sm:$0xf]
    %v203 = vld [vmem:[%s4] sm:$0x1]
    %v205 = vperm.slane %v203, 0
    %v223 = vunpack.c.l.b16 %v187
    %v224 = vunpack.c.l.b16 %v188
    %v225 = vunpack.c.l.b16 %v189
    %v226 = vunpack.c.l.b16 %v190
    %v227 = vunpack.c.l.b16 %v191
    %v228 = vunpack.c.l.b16 %v192
    %v229 = vunpack.c.l.b16 %v193
    %v230 = vunpack.c.l.b16 %v194
    %v231 = vunpack.c.l.b16 %v195
    %v232 = vunpack.c.l.b16 %v196
    %v233 = vunpack.c.l.b16 %v197
    %v234 = vunpack.c.l.b16 %v198
    %v235 = vunpack.c.l.b16 %v199
    %v236 = vunpack.c.l.b16 %v200
    %v237 = vunpack.c.l.b16 %v201
    %v238 = vunpack.c.l.b16 %v202
    %v239 = vpack.c.b16 %v224, %v223
    %v240 = vpack.c.b16 %v226, %v225
    %v241 = vpack.c.b16 %v228, %v227
    %v242 = vpack.c.b16 %v230, %v229
    %v243 = vpack.c.b16 %v232, %v231
    %v244 = vpack.c.b16 %v234, %v233
    %v245 = vpack.c.b16 %v236, %v235
    %v246 = vpack.c.b16 %v238, %v237
    %255 = vmatpush.bf16.msra.mxu0 %v246
    %256 = vmatpush.bf16.msra.mxu0 %v245
    %257 = vmatpush.bf16.msra.mxu0 %v244
    %258 = vmatpush.bf16.msra.mxu0 %v243
    %259 = vmatpush.bf16.msra.mxu0 %v242
    %260 = vmatpush.bf16.msra.mxu0 %v241
    %261 = vmatpush.bf16.msra.mxu0 %v240
    %262 = vmatpush.bf16.msra.mxu0 %v239
    %263 = vmatmul.bf16.gmra.mxu0 %v186
    %v264 = vpop.f32.mrf.mxu0
    %v265 = vadd.f32 %v205, %v264
    %v266 = vpop.f32.mrf.mxu0
    %v267 = vadd.f32 %v205, %v266
    %268 = vdwg.mxu0
    %v269 = vmax.f32 %v265, 0.0
    %v270 = vmax.f32 %v267, 0.0
    %271 = vst [vmem:[#allocation2] sm:$0xff] %v269
    %272 = vst [vmem:[#allocation2 + $0x8] sm:$0xff] %v270
    %v273 = vld [vmem:[#allocation2] sm:$0xff]
    %v274 = vld [vmem:[#allocation2 + $0x8] sm:$0xff]
    %v275 = vpack.c.bf16 %v274, %v273
    %v276 = vld [vmem:[#allocation9] sm:$0xf]
    %v277 = vld [vmem:[#allocation9 + $0x4] sm:$0xf]
    %v278 = vld [vmem:[#allocation9 + $0x8] sm:$0xf]
    %v279 = vld [vmem:[#allocation9 + $0xc] sm:$0xf]
    %v280 = vld [vmem:[#allocation9 + $0x10] sm:$0xf]
    %v281 = vld [vmem:[#allocation9 + $0x14] sm:$0xf]
    %v282 = vld [vmem:[#allocation9 + $0x18] sm:$0xf]
    %v283 = vld [vmem:[#allocation9 + $0x1c] sm:$0xf]
    %v284 = vld [vmem:[#allocation9 + $0x20] sm:$0xf]
    %v285 = vld [vmem:[#allocation9 + $0x24] sm:$0xf]
    %v286 = vld [vmem:[#allocation9 + $0x28] sm:$0xf]
    %v287 = vld [vmem:[#allocation9 + $0x2c] sm:$0xf]
    %v288 = vld [vmem:[#allocation9 + $0x30] sm:$0xf]
    %v289 = vld [vmem:[#allocation9 + $0x34] sm:$0xf]
    %v290 = vld [vmem:[#allocation9 + $0x38] sm:$0xf]
    %v291 = vld [vmem:[#allocation9 + $0x3c] sm:$0xf]
    %v292 = vld [vmem:[%s6] sm:$0x1]
    %v294 = vperm.slane %v292, 0
    %v312 = vunpack.c.l.b16 %v276
    %v313 = vunpack.c.l.b16 %v277
    %v314 = vunpack.c.l.b16 %v278
    %v315 = vunpack.c.l.b16 %v279
    %v316 = vunpack.c.l.b16 %v280
    %v317 = vunpack.c.l.b16 %v281
    %v318 = vunpack.c.l.b16 %v282
    %v319 = vunpack.c.l.b16 %v283
    %v320 = vunpack.c.l.b16 %v284
    %v321 = vunpack.c.l.b16 %v285
    %v322 = vunpack.c.l.b16 %v286
    %v323 = vunpack.c.l.b16 %v287
    %v324 = vunpack.c.l.b16 %v288
    %v325 = vunpack.c.l.b16 %v289
    %v326 = vunpack.c.l.b16 %v290
    %v327 = vunpack.c.l.b16 %v291
    %v328 = vpack.c.b16 %v313, %v312
    %v329 = vpack.c.b16 %v315, %v314
    %v330 = vpack.c.b16 %v317, %v316
    %v331 = vpack.c.b16 %v319, %v318
    %v332 = vpack.c.b16 %v321, %v320
    %v333 = vpack.c.b16 %v323, %v322
    %v334 = vpack.c.b16 %v325, %v324
    %v335 = vpack.c.b16 %v327, %v326
    %344 = vmatpush.bf16.msra.mxu0 %v335
    %345 = vmatpush.bf16.msra.mxu0 %v334
    %346 = vmatpush.bf16.msra.mxu0 %v333
    %347 = vmatpush.bf16.msra.mxu0 %v332
    %348 = vmatpush.bf16.msra.mxu0 %v331
    %349 = vmatpush.bf16.msra.mxu0 %v330
    %350 = vmatpush.bf16.msra.mxu0 %v329
    %351 = vmatpush.bf16.msra.mxu0 %v328
    %352 = vmatmul.bf16.gmra.mxu0 %v275
    %v353 = vpop.f32.mrf.mxu0
    %v354 = vadd.f32 %v294, %v353
    %v355 = vpop.f32.mrf.mxu0
    %v356 = vadd.f32 %v294, %v355
    %357 = vdwg.mxu0
    %358 = vst [vmem:[#allocation11] sm:$0xff] %v354
    %359 = vst [vmem:[#allocation11 + $0x8] sm:$0xff] %v356
    // Predicated region
    $region46: #{tpu_custom_call.1} parent=1 // pred_check
      _
    $region47: #{tpu_custom_call.1} parent=1 // pred_check_branch
      %361 = sbr.rel (0) target = $region49
    $region48: #{tpu_custom_call.1} parent=1 // pred_region
      %363 = vsyncadd [#allocation5], 0
      %s364 = sshll.u32 [#allocation11], 4
      %s365 = int_to_ptr.vmem [resolvable:$true] %s364
      %s366 = sshll.u32 %s7, 4
      %s367 = int_to_ptr.hbm [resolvable:$true] %s366
      %372 = dma.vmem_to_hbm [thread:$0]  %s365, 256, %s367, [#allocation5], 128, 128, 8
    $region49: #{tpu_custom_call.1} parent=1 // pred_fallthru
      _
    // Predicated region
    $region50: #{tpu_custom_call.1} parent=1 // pred_check
      _
    $region51: #{tpu_custom_call.1} parent=1 // pred_check_branch
      %374 = sbr.rel (0) target = $region53
    $region52: #{tpu_custom_call.1} parent=1 // pred_region
      %376 = dma.done [#allocation5], 256
    $region53: #{tpu_custom_call.1} parent=1 // pred_fallthru
      _
    %377 = vsyncpa [#allocation4], 1
    %378 = vsyncpa [#allocation7], 1
    %379 = vsyncpa [#allocation10], 1
    %380 = vsyncpa [#allocation5], 1

</llo_original>
